<compile_context>
chip_gen: v5e
topology: v5e:2x2
jax: 0.10.0
libtpu: 0.0.40
codegen_flags: <defaults>
</compile_context>

<pallas_src>
import jax
import jax.numpy as jnp
from jax import lax
from jax.experimental import pallas as pl
from jax.experimental.pallas import tpu as pltpu
import numpy as np


def _fps_kernel(nvalid_ref,       # SMEM (B,) int32 -- scalar prefetch (valid point counts)
                coords_ref,       # VMEM (3, N_pad) f32 (batch dim squeezed): rows x, y, z
                sampled_ref):     # VMEM (3, Q)     f32 out: sampled coords, lane-dense on Q
    b = pl.program_id(0)
    n_valid = nvalid_ref[b]

    # Keep x / y / z as separate (1, N_pad) rows: all per-iteration work stays
    # lane-parallel, no cross-sublane reductions.
    x = coords_ref[pl.ds(0, 1), :]
    y = coords_ref[pl.ds(1, 1), :]
    z = coords_ref[pl.ds(2, 1), :]
    n_pad = x.shape[1]
    num_q = sampled_ref.shape[1]

    lane_iota = lax.broadcasted_iota(jnp.int32, (1, n_pad), 1)
    q_iota = lax.broadcasted_iota(jnp.int32, (1, num_q), 1)
    valid = lane_iota < n_valid

    # Running min squared-distance to the selected set; padded lanes pinned to -inf
    # so they can never win the argmax.
    dist0 = jnp.where(valid,
                      jnp.full((1, n_pad), jnp.inf, jnp.float32),
                      jnp.full((1, n_pad), -jnp.inf, jnp.float32))

    # First selected point is index 0 (static lane slice, no gather needed).
    cx0 = x[:, 0:1]
    cy0 = y[:, 0:1]
    cz0 = z[:, 0:1]
    acc0 = jnp.zeros((1, num_q), jnp.float32)

    def body(k, carry):
        dist, ax, ay, az, cx, cy, cz = carry

        # Record the coordinates of the currently selected point into column k.
        write = q_iota == k
        ax = jnp.where(write, cx, ax)
        ay = jnp.where(write, cy, ay)
        az = jnp.where(write, cz, az)

        # Lane-parallel squared distance to the current point.
        dx = x - cx
        dy = y - cy
        dz = z - cz
        d = dx * dx + dy * dy + dz * dz
        new_dist = jnp.minimum(dist, d)

        # Next farthest point: first (smallest) index attaining the max.
        m = jnp.max(new_dist)
        idx = jnp.min(jnp.where(new_dist == m, lane_iota, n_pad))

        # Fetch its coordinates with three (1, N_pad) masked lane reductions.
        onehot = (lane_iota == idx).astype(jnp.float32)
        ncx = jnp.sum(x * onehot, axis=1, keepdims=True)
        ncy = jnp.sum(y * onehot, axis=1, keepdims=True)
        ncz = jnp.sum(z * onehot, axis=1, keepdims=True)
        return new_dist, ax, ay, az, ncx, ncy, ncz

    _, ax, ay, az, _, _, _ = lax.fori_loop(
        0, num_q, body, (dist0, acc0, acc0, acc0, cx0, cy0, cz0), unroll=True)

    sampled_ref[pl.ds(0, 1), :] = ax
    sampled_ref[pl.ds(1, 1), :] = ay
    sampled_ref[pl.ds(2, 1), :] = az


def query_initializer_fwd(coordinates, query_weight):
    """coordinates: list of (N_i, 3) float arrays; query_weight: (Q, D) float32."""
    batch_size = len(coordinates)
    num_q, query_dim = query_weight.shape

    n_max = max(int(c.shape[0]) for c in coordinates)
    n_pad = int(pl.cdiv(n_max, 128)) * 128

    # Host-side padding in numpy: one transfer, no device dynamic-update-slices.
    coords_np = np.zeros((batch_size, 3, n_pad), np.float32)
    nvalid_np = np.zeros((batch_size,), np.int32)
    for i, c in enumerate(coordinates):
        c_np = np.asarray(c, np.float32)
        coords_np[i, :, : c_np.shape[0]] = c_np.T
        nvalid_np[i] = c_np.shape[0]
    coords_t = jnp.asarray(coords_np)
    nvalid = jnp.asarray(nvalid_np)

    grid_spec = pltpu.PrefetchScalarGridSpec(
        num_scalar_prefetch=1,
        grid=(batch_size,),
        in_specs=[
            pl.BlockSpec((None, 3, n_pad), lambda b, nv: (b, 0, 0)),   # coords (batch squeezed)
        ],
        out_specs=pl.BlockSpec((None, 3, num_q), lambda b, nv: (b, 0, 0)),
    )

    sampled_3q = pl.pallas_call(
        _fps_kernel,
        out_shape=jax.ShapeDtypeStruct((batch_size, 3, num_q), jnp.float32),
        grid_spec=grid_spec,
        compiler_params=pltpu.CompilerParams(dimension_semantics=("parallel",)),
    )(nvalid, coords_t)

    # PyTorch convention: (B, Q, 3).
    sampled_coords = jnp.transpose(sampled_3q, (0, 2, 1))

    # Learnable queries: pure broadcast of the embedding table, done by XLA.
    queries = jnp.broadcast_to(
        jnp.asarray(query_weight, jnp.float32)[None, :, :],
        (batch_size, num_q, query_dim))
    return queries, sampled_coords


def _fps_ref(points, num_samples):
    """Pure-JAX furthest-point-sampling reference (same semantics as the CUDA op:
    start at index 0, iteratively pick argmax of min-distance-to-selected-set)."""
    n = points.shape[0]

    def body(k, carry):
        dist, last, out = carry
        cur = points[last]
        out = out.at[k, :].set(cur)
        d = jnp.sum((points - cur[None, :]) ** 2, axis=-1)
        dist = jnp.minimum(dist, d)
        return dist, jnp.argmax(dist).astype(jnp.int32), out

    dist0 = jnp.full((n,), jnp.inf, jnp.float32)
    out0 = jnp.zeros((num_samples, points.shape[1]), jnp.float32)
    _, _, out = lax.fori_loop(0, num_samples, body, (dist0, jnp.int32(0), out0))
    return out


if __name__ == "__main__":
    key = jax.random.PRNGKey(0)
    k1, k2, k3 = jax.random.split(key, 3)

    batch_size, num_queries, query_dim = 2, 8, 32
    coordinates = [
        jax.random.normal(k1, (200, 3), jnp.float32),   # ragged point clouds
        jax.random.normal(k2, (176, 3), jnp.float32),
    ]
    # Deterministic stand-in for nn.Embedding(num_queries, query_dim).weight
    query_weight = jax.random.normal(k3, (num_queries, query_dim), jnp.float32)

    queries, sampled_coords = query_initializer_fwd(coordinates, query_weight)
    queries, sampled_coords = jax.block_until_ready((queries, sampled_coords))

    # Verify against pure-JAX reference of the same forward semantics.
    for i in range(batch_size):
        ref = _fps_ref(coordinates[i], num_queries)
        np.testing.assert_allclose(np.asarray(sampled_coords[i]), np.asarray(ref),
                                   rtol=1e-5, atol=1e-5)
    np.testing.assert_allclose(
        np.asarray(queries),
        np.tile(np.asarray(query_weight)[None], (batch_size, 1, 1)),
        rtol=0, atol=0)

    print("KERNEL_OK")
</pallas_src>

<mosaic_0001>
module attributes {stable_mosaic.version = 11 : i64} {
  func.func @_fps_kernel(%arg0: i32, %arg1: memref<2xi32, #tpu.memory_space<smem>>, %arg2: memref<1x3x256xf32, #tpu.memory_space<vmem>>, %arg3: memref<1x3x8xf32, #tpu.memory_space<vmem>>) attributes {dimension_semantics = [#tpu.dimension_semantics<parallel>], iteration_bounds = array<i64: 2>, scalar_prefetch = 1 : i64, scratch_operands = 0 : i64, tpu.core_type = #tpu.core_type<tc>, window_params = [{transform_indices = @transform_0, window_bounds = array<i64: 1, 3, 256>}, {transform_indices = @transform_1, window_bounds = array<i64: 1, 3, 8>}]} {
    %0 = arith.index_cast %arg0 : i32 to index
    %1 = memref.load %arg1[%0] : memref<2xi32, #tpu.memory_space<smem>>
    %c0 = arith.constant 0 : index
    %c0_0 = arith.constant 0 : index
    %c0_1 = arith.constant 0 : index
    %2 = vector.load %arg2[%c0, %c0_0, %c0_1] : memref<1x3x256xf32, #tpu.memory_space<vmem>>, vector<1x1x256xf32>
    %3 = vector.shape_cast %2 : vector<1x1x256xf32> to vector<1x256xf32>
    %c0_2 = arith.constant 0 : index
    %c1 = arith.constant 1 : index
    %c0_3 = arith.constant 0 : index
    %4 = vector.load %arg2[%c0_2, %c1, %c0_3] : memref<1x3x256xf32, #tpu.memory_space<vmem>>, vector<1x1x256xf32>
    %5 = vector.shape_cast %4 : vector<1x1x256xf32> to vector<1x256xf32>
    %c0_4 = arith.constant 0 : index
    %c2 = arith.constant 2 : index
    %c0_5 = arith.constant 0 : index
    %6 = vector.load %arg2[%c0_4, %c2, %c0_5] : memref<1x3x256xf32, #tpu.memory_space<vmem>>, vector<1x1x256xf32>
    %7 = vector.shape_cast %6 : vector<1x1x256xf32> to vector<1x256xf32>
    %8 = tpu.iota {dimensions = array<i32: 1>} : vector<1x256xi32>
    %9 = tpu.iota {dimensions = array<i32: 1>} : vector<1x8xi32>
    %10 = vector.broadcast %1 : i32 to vector<1x256xi32>
    %11 = arith.cmpi slt, %8, %10 : vector<1x256xi32>
    %cst = arith.constant 0x7F800000 : f32
    %12 = vector.broadcast %cst : f32 to vector<1x256xf32>
    %cst_6 = arith.constant 0xFF800000 : f32
    %13 = vector.broadcast %cst_6 : f32 to vector<1x256xf32>
    %14 = arith.select %11, %12, %13 : vector<1x256xi1>, vector<1x256xf32>
    %15 = vector.extract_strided_slice %3 {offsets = [0, 0], sizes = [1, 1], strides = [1, 1]} : vector<1x256xf32> to vector<1x1xf32>
    %16 = vector.extract_strided_slice %5 {offsets = [0, 0], sizes = [1, 1], strides = [1, 1]} : vector<1x256xf32> to vector<1x1xf32>
    %17 = vector.extract_strided_slice %7 {offsets = [0, 0], sizes = [1, 1], strides = [1, 1]} : vector<1x256xf32> to vector<1x1xf32>
    %cst_7 = arith.constant 0.000000e+00 : f32
    %18 = vector.broadcast %cst_7 : f32 to vector<1x8xf32>
    %c0_i32 = arith.constant 0 : i32
    %19 = vector.broadcast %c0_i32 : i32 to vector<1x8xi32>
    %20 = arith.cmpi eq, %9, %19 : vector<1x8xi32>
    %21 = vector.shape_cast %15 : vector<1x1xf32> to vector<1x1xf32>
    %22 = vector.broadcast %21 : vector<1x1xf32> to vector<1x8xf32>
    %23 = arith.select %20, %22, %18 : vector<1x8xi1>, vector<1x8xf32>
    %24 = vector.shape_cast %16 : vector<1x1xf32> to vector<1x1xf32>
    %25 = vector.broadcast %24 : vector<1x1xf32> to vector<1x8xf32>
    %26 = arith.select %20, %25, %18 : vector<1x8xi1>, vector<1x8xf32>
    %27 = vector.shape_cast %17 : vector<1x1xf32> to vector<1x1xf32>
    %28 = vector.broadcast %27 : vector<1x1xf32> to vector<1x8xf32>
    %29 = arith.select %20, %28, %18 : vector<1x8xi1>, vector<1x8xf32>
    %30 = vector.broadcast %15 : vector<1x1xf32> to vector<1x256xf32>
    %31 = arith.subf %3, %30 : vector<1x256xf32>
    %32 = vector.broadcast %16 : vector<1x1xf32> to vector<1x256xf32>
    %33 = arith.subf %5, %32 : vector<1x256xf32>
    %34 = vector.broadcast %17 : vector<1x1xf32> to vector<1x256xf32>
    %35 = arith.subf %7, %34 : vector<1x256xf32>
    %36 = arith.mulf %31, %31 : vector<1x256xf32>
    %37 = arith.mulf %33, %33 : vector<1x256xf32>
    %38 = arith.addf %36, %37 : vector<1x256xf32>
    %39 = arith.mulf %35, %35 : vector<1x256xf32>
    %40 = arith.addf %38, %39 : vector<1x256xf32>
    %41 = arith.minimumf %14, %40 : vector<1x256xf32>
    %42 = vector.shape_cast %41 : vector<1x256xf32> to vector<1x1x256xf32>
    %cst_8 = arith.constant dense<0xFF800000> : vector<1xf32>
    %43 = vector.multi_reduction <maximumf>, %42, %cst_8 [1, 2] : vector<1x1x256xf32> to vector<1xf32>
    %44 = vector.shape_cast %43 : vector<1xf32> to vector<1x1x1xf32>
    %45 = vector.extract %44[0, 0, 0] : f32 from vector<1x1x1xf32>
    %46 = vector.broadcast %45 : f32 to vector<1x256xf32>
    %47 = arith.cmpf oeq, %41, %46 : vector<1x256xf32>
    %c256_i32 = arith.constant 256 : i32
    %48 = vector.broadcast %c256_i32 : i32 to vector<1x256xi32>
    %49 = arith.select %47, %8, %48 : vector<1x256xi1>, vector<1x256xi32>
    %50 = vector.shape_cast %49 : vector<1x256xi32> to vector<1x1x256xi32>
    %cst_9 = arith.constant dense<2147483647> : vector<1xi32>
    %51 = vector.multi_reduction <minsi>, %50, %cst_9 [1, 2] : vector<1x1x256xi32> to vector<1xi32>
    %52 = vector.shape_cast %51 : vector<1xi32> to vector<1x1x1xi32>
    %53 = vector.extract %52[0, 0, 0] : i32 from vector<1x1x1xi32>
    %54 = vector.broadcast %53 : i32 to vector<1x256xi32>
    %55 = arith.cmpi eq, %8, %54 : vector<1x256xi32>
    %56 = arith.extui %55 : vector<1x256xi1> to vector<1x256xi32>
    %57 = arith.sitofp %56 : vector<1x256xi32> to vector<1x256xf32>
    %58 = arith.mulf %3, %57 : vector<1x256xf32>
    %cst_10 = arith.constant dense<0.000000e+00> : vector<1xf32>
    %59 = vector.multi_reduction <add>, %58, %cst_10 [1] : vector<1x256xf32> to vector<1xf32>
    %60 = vector.shape_cast %59 : vector<1xf32> to vector<1x1xf32>
    %61 = arith.mulf %5, %57 : vector<1x256xf32>
    %cst_11 = arith.constant dense<0.000000e+00> : vector<1xf32>
    %62 = vector.multi_reduction <add>, %61, %cst_11 [1] : vector<1x256xf32> to vector<1xf32>
    %63 = vector.shape_cast %62 : vector<1xf32> to vector<1x1xf32>
    %64 = arith.mulf %7, %57 : vector<1x256xf32>
    %cst_12 = arith.constant dense<0.000000e+00> : vector<1xf32>
    %65 = vector.multi_reduction <add>, %64, %cst_12 [1] : vector<1x256xf32> to vector<1xf32>
    %66 = vector.shape_cast %65 : vector<1xf32> to vector<1x1xf32>
    %c1_i32 = arith.constant 1 : i32
    %67 = vector.broadcast %c1_i32 : i32 to vector<1x8xi32>
    %68 = arith.cmpi eq, %9, %67 : vector<1x8xi32>
    %69 = vector.shape_cast %60 : vector<1x1xf32> to vector<1x1xf32>
    %70 = vector.broadcast %69 : vector<1x1xf32> to vector<1x8xf32>
    %71 = arith.select %68, %70, %23 : vector<1x8xi1>, vector<1x8xf32>
    %72 = vector.shape_cast %63 : vector<1x1xf32> to vector<1x1xf32>
    %73 = vector.broadcast %72 : vector<1x1xf32> to vector<1x8xf32>
    %74 = arith.select %68, %73, %26 : vector<1x8xi1>, vector<1x8xf32>
    %75 = vector.shape_cast %66 : vector<1x1xf32> to vector<1x1xf32>
    %76 = vector.broadcast %75 : vector<1x1xf32> to vector<1x8xf32>
    %77 = arith.select %68, %76, %29 : vector<1x8xi1>, vector<1x8xf32>
    %78 = vector.broadcast %60 : vector<1x1xf32> to vector<1x256xf32>
    %79 = arith.subf %3, %78 : vector<1x256xf32>
    %80 = vector.broadcast %63 : vector<1x1xf32> to vector<1x256xf32>
    %81 = arith.subf %5, %80 : vector<1x256xf32>
    %82 = vector.broadcast %66 : vector<1x1xf32> to vector<1x256xf32>
    %83 = arith.subf %7, %82 : vector<1x256xf32>
    %84 = arith.mulf %79, %79 : vector<1x256xf32>
    %85 = arith.mulf %81, %81 : vector<1x256xf32>
    %86 = arith.addf %84, %85 : vector<1x256xf32>
    %87 = arith.mulf %83, %83 : vector<1x256xf32>
    %88 = arith.addf %86, %87 : vector<1x256xf32>
    %89 = arith.minimumf %41, %88 : vector<1x256xf32>
    %90 = vector.shape_cast %89 : vector<1x256xf32> to vector<1x1x256xf32>
    %cst_13 = arith.constant dense<0xFF800000> : vector<1xf32>
    %91 = vector.multi_reduction <maximumf>, %90, %cst_13 [1, 2] : vector<1x1x256xf32> to vector<1xf32>
    %92 = vector.shape_cast %91 : vector<1xf32> to vector<1x1x1xf32>
    %93 = vector.extract %92[0, 0, 0] : f32 from vector<1x1x1xf32>
    %94 = vector.broadcast %93 : f32 to vector<1x256xf32>
    %95 = arith.cmpf oeq, %89, %94 : vector<1x256xf32>
    %c256_i32_14 = arith.constant 256 : i32
    %96 = vector.broadcast %c256_i32_14 : i32 to vector<1x256xi32>
    %97 = arith.select %95, %8, %96 : vector<1x256xi1>, vector<1x256xi32>
    %98 = vector.shape_cast %97 : vector<1x256xi32> to vector<1x1x256xi32>
    %cst_15 = arith.constant dense<2147483647> : vector<1xi32>
    %99 = vector.multi_reduction <minsi>, %98, %cst_15 [1, 2] : vector<1x1x256xi32> to vector<1xi32>
    %100 = vector.shape_cast %99 : vector<1xi32> to vector<1x1x1xi32>
    %101 = vector.extract %100[0, 0, 0] : i32 from vector<1x1x1xi32>
    %102 = vector.broadcast %101 : i32 to vector<1x256xi32>
    %103 = arith.cmpi eq, %8, %102 : vector<1x256xi32>
    %104 = arith.extui %103 : vector<1x256xi1> to vector<1x256xi32>
    %105 = arith.sitofp %104 : vector<1x256xi32> to vector<1x256xf32>
    %106 = arith.mulf %3, %105 : vector<1x256xf32>
    %cst_16 = arith.constant dense<0.000000e+00> : vector<1xf32>
    %107 = vector.multi_reduction <add>, %106, %cst_16 [1] : vector<1x256xf32> to vector<1xf32>
    %108 = vector.shape_cast %107 : vector<1xf32> to vector<1x1xf32>
    %109 = arith.mulf %5, %105 : vector<1x256xf32>
    %cst_17 = arith.constant dense<0.000000e+00> : vector<1xf32>
    %110 = vector.multi_reduction <add>, %109, %cst_17 [1] : vector<1x256xf32> to vector<1xf32>
    %111 = vector.shape_cast %110 : vector<1xf32> to vector<1x1xf32>
    %112 = arith.mulf %7, %105 : vector<1x256xf32>
    %cst_18 = arith.constant dense<0.000000e+00> : vector<1xf32>
    %113 = vector.multi_reduction <add>, %112, %cst_18 [1] : vector<1x256xf32> to vector<1xf32>
    %114 = vector.shape_cast %113 : vector<1xf32> to vector<1x1xf32>
    %c2_i32 = arith.constant 2 : i32
    %115 = vector.broadcast %c2_i32 : i32 to vector<1x8xi32>
    %116 = arith.cmpi eq, %9, %115 : vector<1x8xi32>
    %117 = vector.shape_cast %108 : vector<1x1xf32> to vector<1x1xf32>
    %118 = vector.broadcast %117 : vector<1x1xf32> to vector<1x8xf32>
    %119 = arith.select %116, %118, %71 : vector<1x8xi1>, vector<1x8xf32>
    %120 = vector.shape_cast %111 : vector<1x1xf32> to vector<1x1xf32>
    %121 = vector.broadcast %120 : vector<1x1xf32> to vector<1x8xf32>
    %122 = arith.select %116, %121, %74 : vector<1x8xi1>, vector<1x8xf32>
    %123 = vector.shape_cast %114 : vector<1x1xf32> to vector<1x1xf32>
    %124 = vector.broadcast %123 : vector<1x1xf32> to vector<1x8xf32>
    %125 = arith.select %116, %124, %77 : vector<1x8xi1>, vector<1x8xf32>
    %126 = vector.broadcast %108 : vector<1x1xf32> to vector<1x256xf32>
    %127 = arith.subf %3, %126 : vector<1x256xf32>
    %128 = vector.broadcast %111 : vector<1x1xf32> to vector<1x256xf32>
    %129 = arith.subf %5, %128 : vector<1x256xf32>
    %130 = vector.broadcast %114 : vector<1x1xf32> to vector<1x256xf32>
    %131 = arith.subf %7, %130 : vector<1x256xf32>
    %132 = arith.mulf %127, %127 : vector<1x256xf32>
    %133 = arith.mulf %129, %129 : vector<1x256xf32>
    %134 = arith.addf %132, %133 : vector<1x256xf32>
    %135 = arith.mulf %131, %131 : vector<1x256xf32>
    %136 = arith.addf %134, %135 : vector<1x256xf32>
    %137 = arith.minimumf %89, %136 : vector<1x256xf32>
    %138 = vector.shape_cast %137 : vector<1x256xf32> to vector<1x1x256xf32>
    %cst_19 = arith.constant dense<0xFF800000> : vector<1xf32>
    %139 = vector.multi_reduction <maximumf>, %138, %cst_19 [1, 2] : vector<1x1x256xf32> to vector<1xf32>
    %140 = vector.shape_cast %139 : vector<1xf32> to vector<1x1x1xf32>
    %141 = vector.extract %140[0, 0, 0] : f32 from vector<1x1x1xf32>
    %142 = vector.broadcast %141 : f32 to vector<1x256xf32>
    %143 = arith.cmpf oeq, %137, %142 : vector<1x256xf32>
    %c256_i32_20 = arith.constant 256 : i32
    %144 = vector.broadcast %c256_i32_20 : i32 to vector<1x256xi32>
    %145 = arith.select %143, %8, %144 : vector<1x256xi1>, vector<1x256xi32>
    %146 = vector.shape_cast %145 : vector<1x256xi32> to vector<1x1x256xi32>
    %cst_21 = arith.constant dense<2147483647> : vector<1xi32>
    %147 = vector.multi_reduction <minsi>, %146, %cst_21 [1, 2] : vector<1x1x256xi32> to vector<1xi32>
    %148 = vector.shape_cast %147 : vector<1xi32> to vector<1x1x1xi32>
    %149 = vector.extract %148[0, 0, 0] : i32 from vector<1x1x1xi32>
    %150 = vector.broadcast %149 : i32 to vector<1x256xi32>
    %151 = arith.cmpi eq, %8, %150 : vector<1x256xi32>
    %152 = arith.extui %151 : vector<1x256xi1> to vector<1x256xi32>
    %153 = arith.sitofp %152 : vector<1x256xi32> to vector<1x256xf32>
    %154 = arith.mulf %3, %153 : vector<1x256xf32>
    %cst_22 = arith.constant dense<0.000000e+00> : vector<1xf32>
    %155 = vector.multi_reduction <add>, %154, %cst_22 [1] : vector<1x256xf32> to vector<1xf32>
    %156 = vector.shape_cast %155 : vector<1xf32> to vector<1x1xf32>
    %157 = arith.mulf %5, %153 : vector<1x256xf32>
    %cst_23 = arith.constant dense<0.000000e+00> : vector<1xf32>
    %158 = vector.multi_reduction <add>, %157, %cst_23 [1] : vector<1x256xf32> to vector<1xf32>
    %159 = vector.shape_cast %158 : vector<1xf32> to vector<1x1xf32>
    %160 = arith.mulf %7, %153 : vector<1x256xf32>
    %cst_24 = arith.constant dense<0.000000e+00> : vector<1xf32>
    %161 = vector.multi_reduction <add>, %160, %cst_24 [1] : vector<1x256xf32> to vector<1xf32>
    %162 = vector.shape_cast %161 : vector<1xf32> to vector<1x1xf32>
    %c3_i32 = arith.constant 3 : i32
    %163 = vector.broadcast %c3_i32 : i32 to vector<1x8xi32>
    %164 = arith.cmpi eq, %9, %163 : vector<1x8xi32>
    %165 = vector.shape_cast %156 : vector<1x1xf32> to vector<1x1xf32>
    %166 = vector.broadcast %165 : vector<1x1xf32> to vector<1x8xf32>
    %167 = arith.select %164, %166, %119 : vector<1x8xi1>, vector<1x8xf32>
    %168 = vector.shape_cast %159 : vector<1x1xf32> to vector<1x1xf32>
    %169 = vector.broadcast %168 : vector<1x1xf32> to vector<1x8xf32>
    %170 = arith.select %164, %169, %122 : vector<1x8xi1>, vector<1x8xf32>
    %171 = vector.shape_cast %162 : vector<1x1xf32> to vector<1x1xf32>
    %172 = vector.broadcast %171 : vector<1x1xf32> to vector<1x8xf32>
    %173 = arith.select %164, %172, %125 : vector<1x8xi1>, vector<1x8xf32>
    %174 = vector.broadcast %156 : vector<1x1xf32> to vector<1x256xf32>
    %175 = arith.subf %3, %174 : vector<1x256xf32>
    %176 = vector.broadcast %159 : vector<1x1xf32> to vector<1x256xf32>
    %177 = arith.subf %5, %176 : vector<1x256xf32>
    %178 = vector.broadcast %162 : vector<1x1xf32> to vector<1x256xf32>
    %179 = arith.subf %7, %178 : vector<1x256xf32>
    %180 = arith.mulf %175, %175 : vector<1x256xf32>
    %181 = arith.mulf %177, %177 : vector<1x256xf32>
    %182 = arith.addf %180, %181 : vector<1x256xf32>
    %183 = arith.mulf %179, %179 : vector<1x256xf32>
    %184 = arith.addf %182, %183 : vector<1x256xf32>
    %185 = arith.minimumf %137, %184 : vector<1x256xf32>
    %186 = vector.shape_cast %185 : vector<1x256xf32> to vector<1x1x256xf32>
    %cst_25 = arith.constant dense<0xFF800000> : vector<1xf32>
    %187 = vector.multi_reduction <maximumf>, %186, %cst_25 [1, 2] : vector<1x1x256xf32> to vector<1xf32>
    %188 = vector.shape_cast %187 : vector<1xf32> to vector<1x1x1xf32>
    %189 = vector.extract %188[0, 0, 0] : f32 from vector<1x1x1xf32>
    %190 = vector.broadcast %189 : f32 to vector<1x256xf32>
    %191 = arith.cmpf oeq, %185, %190 : vector<1x256xf32>
    %c256_i32_26 = arith.constant 256 : i32
    %192 = vector.broadcast %c256_i32_26 : i32 to vector<1x256xi32>
    %193 = arith.select %191, %8, %192 : vector<1x256xi1>, vector<1x256xi32>
    %194 = vector.shape_cast %193 : vector<1x256xi32> to vector<1x1x256xi32>
    %cst_27 = arith.constant dense<2147483647> : vector<1xi32>
    %195 = vector.multi_reduction <minsi>, %194, %cst_27 [1, 2] : vector<1x1x256xi32> to vector<1xi32>
    %196 = vector.shape_cast %195 : vector<1xi32> to vector<1x1x1xi32>
    %197 = vector.extract %196[0, 0, 0] : i32 from vector<1x1x1xi32>
    %198 = vector.broadcast %197 : i32 to vector<1x256xi32>
    %199 = arith.cmpi eq, %8, %198 : vector<1x256xi32>
    %200 = arith.extui %199 : vector<1x256xi1> to vector<1x256xi32>
    %201 = arith.sitofp %200 : vector<1x256xi32> to vector<1x256xf32>
    %202 = arith.mulf %3, %201 : vector<1x256xf32>
    %cst_28 = arith.constant dense<0.000000e+00> : vector<1xf32>
    %203 = vector.multi_reduction <add>, %202, %cst_28 [1] : vector<1x256xf32> to vector<1xf32>
    %204 = vector.shape_cast %203 : vector<1xf32> to vector<1x1xf32>
    %205 = arith.mulf %5, %201 : vector<1x256xf32>
    %cst_29 = arith.constant dense<0.000000e+00> : vector<1xf32>
    %206 = vector.multi_reduction <add>, %205, %cst_29 [1] : vector<1x256xf32> to vector<1xf32>
    %207 = vector.shape_cast %206 : vector<1xf32> to vector<1x1xf32>
    %208 = arith.mulf %7, %201 : vector<1x256xf32>
    %cst_30 = arith.constant dense<0.000000e+00> : vector<1xf32>
    %209 = vector.multi_reduction <add>, %208, %cst_30 [1] : vector<1x256xf32> to vector<1xf32>
    %210 = vector.shape_cast %209 : vector<1xf32> to vector<1x1xf32>
    %c4_i32 = arith.constant 4 : i32
    %211 = vector.broadcast %c4_i32 : i32 to vector<1x8xi32>
    %212 = arith.cmpi eq, %9, %211 : vector<1x8xi32>
    %213 = vector.shape_cast %204 : vector<1x1xf32> to vector<1x1xf32>
    %214 = vector.broadcast %213 : vector<1x1xf32> to vector<1x8xf32>
    %215 = arith.select %212, %214, %167 : vector<1x8xi1>, vector<1x8xf32>
    %216 = vector.shape_cast %207 : vector<1x1xf32> to vector<1x1xf32>
    %217 = vector.broadcast %216 : vector<1x1xf32> to vector<1x8xf32>
    %218 = arith.select %212, %217, %170 : vector<1x8xi1>, vector<1x8xf32>
    %219 = vector.shape_cast %210 : vector<1x1xf32> to vector<1x1xf32>
    %220 = vector.broadcast %219 : vector<1x1xf32> to vector<1x8xf32>
    %221 = arith.select %212, %220, %173 : vector<1x8xi1>, vector<1x8xf32>
    %222 = vector.broadcast %204 : vector<1x1xf32> to vector<1x256xf32>
    %223 = arith.subf %3, %222 : vector<1x256xf32>
    %224 = vector.broadcast %207 : vector<1x1xf32> to vector<1x256xf32>
    %225 = arith.subf %5, %224 : vector<1x256xf32>
    %226 = vector.broadcast %210 : vector<1x1xf32> to vector<1x256xf32>
    %227 = arith.subf %7, %226 : vector<1x256xf32>
    %228 = arith.mulf %223, %223 : vector<1x256xf32>
    %229 = arith.mulf %225, %225 : vector<1x256xf32>
    %230 = arith.addf %228, %229 : vector<1x256xf32>
    %231 = arith.mulf %227, %227 : vector<1x256xf32>
    %232 = arith.addf %230, %231 : vector<1x256xf32>
    %233 = arith.minimumf %185, %232 : vector<1x256xf32>
    %234 = vector.shape_cast %233 : vector<1x256xf32> to vector<1x1x256xf32>
    %cst_31 = arith.constant dense<0xFF800000> : vector<1xf32>
    %235 = vector.multi_reduction <maximumf>, %234, %cst_31 [1, 2] : vector<1x1x256xf32> to vector<1xf32>
    %236 = vector.shape_cast %235 : vector<1xf32> to vector<1x1x1xf32>
    %237 = vector.extract %236[0, 0, 0] : f32 from vector<1x1x1xf32>
    %238 = vector.broadcast %237 : f32 to vector<1x256xf32>
    %239 = arith.cmpf oeq, %233, %238 : vector<1x256xf32>
    %c256_i32_32 = arith.constant 256 : i32
    %240 = vector.broadcast %c256_i32_32 : i32 to vector<1x256xi32>
    %241 = arith.select %239, %8, %240 : vector<1x256xi1>, vector<1x256xi32>
    %242 = vector.shape_cast %241 : vector<1x256xi32> to vector<1x1x256xi32>
    %cst_33 = arith.constant dense<2147483647> : vector<1xi32>
    %243 = vector.multi_reduction <minsi>, %242, %cst_33 [1, 2] : vector<1x1x256xi32> to vector<1xi32>
    %244 = vector.shape_cast %243 : vector<1xi32> to vector<1x1x1xi32>
    %245 = vector.extract %244[0, 0, 0] : i32 from vector<1x1x1xi32>
    %246 = vector.broadcast %245 : i32 to vector<1x256xi32>
    %247 = arith.cmpi eq, %8, %246 : vector<1x256xi32>
    %248 = arith.extui %247 : vector<1x256xi1> to vector<1x256xi32>
    %249 = arith.sitofp %248 : vector<1x256xi32> to vector<1x256xf32>
    %250 = arith.mulf %3, %249 : vector<1x256xf32>
    %cst_34 = arith.constant dense<0.000000e+00> : vector<1xf32>
    %251 = vector.multi_reduction <add>, %250, %cst_34 [1] : vector<1x256xf32> to vector<1xf32>
    %252 = vector.shape_cast %251 : vector<1xf32> to vector<1x1xf32>
    %253 = arith.mulf %5, %249 : vector<1x256xf32>
    %cst_35 = arith.constant dense<0.000000e+00> : vector<1xf32>
    %254 = vector.multi_reduction <add>, %253, %cst_35 [1] : vector<1x256xf32> to vector<1xf32>
    %255 = vector.shape_cast %254 : vector<1xf32> to vector<1x1xf32>
    %256 = arith.mulf %7, %249 : vector<1x256xf32>
    %cst_36 = arith.constant dense<0.000000e+00> : vector<1xf32>
    %257 = vector.multi_reduction <add>, %256, %cst_36 [1] : vector<1x256xf32> to vector<1xf32>
    %258 = vector.shape_cast %257 : vector<1xf32> to vector<1x1xf32>
    %c5_i32 = arith.constant 5 : i32
    %259 = vector.broadcast %c5_i32 : i32 to vector<1x8xi32>
    %260 = arith.cmpi eq, %9, %259 : vector<1x8xi32>
    %261 = vector.shape_cast %252 : vector<1x1xf32> to vector<1x1xf32>
    %262 = vector.broadcast %261 : vector<1x1xf32> to vector<1x8xf32>
    %263 = arith.select %260, %262, %215 : vector<1x8xi1>, vector<1x8xf32>
    %264 = vector.shape_cast %255 : vector<1x1xf32> to vector<1x1xf32>
    %265 = vector.broadcast %264 : vector<1x1xf32> to vector<1x8xf32>
    %266 = arith.select %260, %265, %218 : vector<1x8xi1>, vector<1x8xf32>
    %267 = vector.shape_cast %258 : vector<1x1xf32> to vector<1x1xf32>
    %268 = vector.broadcast %267 : vector<1x1xf32> to vector<1x8xf32>
    %269 = arith.select %260, %268, %221 : vector<1x8xi1>, vector<1x8xf32>
    %270 = vector.broadcast %252 : vector<1x1xf32> to vector<1x256xf32>
    %271 = arith.subf %3, %270 : vector<1x256xf32>
    %272 = vector.broadcast %255 : vector<1x1xf32> to vector<1x256xf32>
    %273 = arith.subf %5, %272 : vector<1x256xf32>
    %274 = vector.broadcast %258 : vector<1x1xf32> to vector<1x256xf32>
    %275 = arith.subf %7, %274 : vector<1x256xf32>
    %276 = arith.mulf %271, %271 : vector<1x256xf32>
    %277 = arith.mulf %273, %273 : vector<1x256xf32>
    %278 = arith.addf %276, %277 : vector<1x256xf32>
    %279 = arith.mulf %275, %275 : vector<1x256xf32>
    %280 = arith.addf %278, %279 : vector<1x256xf32>
    %281 = arith.minimumf %233, %280 : vector<1x256xf32>
    %282 = vector.shape_cast %281 : vector<1x256xf32> to vector<1x1x256xf32>
    %cst_37 = arith.constant dense<0xFF800000> : vector<1xf32>
    %283 = vector.multi_reduction <maximumf>, %282, %cst_37 [1, 2] : vector<1x1x256xf32> to vector<1xf32>
    %284 = vector.shape_cast %283 : vector<1xf32> to vector<1x1x1xf32>
    %285 = vector.extract %284[0, 0, 0] : f32 from vector<1x1x1xf32>
    %286 = vector.broadcast %285 : f32 to vector<1x256xf32>
    %287 = arith.cmpf oeq, %281, %286 : vector<1x256xf32>
    %c256_i32_38 = arith.constant 256 : i32
    %288 = vector.broadcast %c256_i32_38 : i32 to vector<1x256xi32>
    %289 = arith.select %287, %8, %288 : vector<1x256xi1>, vector<1x256xi32>
    %290 = vector.shape_cast %289 : vector<1x256xi32> to vector<1x1x256xi32>
    %cst_39 = arith.constant dense<2147483647> : vector<1xi32>
    %291 = vector.multi_reduction <minsi>, %290, %cst_39 [1, 2] : vector<1x1x256xi32> to vector<1xi32>
    %292 = vector.shape_cast %291 : vector<1xi32> to vector<1x1x1xi32>
    %293 = vector.extract %292[0, 0, 0] : i32 from vector<1x1x1xi32>
    %294 = vector.broadcast %293 : i32 to vector<1x256xi32>
    %295 = arith.cmpi eq, %8, %294 : vector<1x256xi32>
    %296 = arith.extui %295 : vector<1x256xi1> to vector<1x256xi32>
    %297 = arith.sitofp %296 : vector<1x256xi32> to vector<1x256xf32>
    %298 = arith.mulf %3, %297 : vector<1x256xf32>
    %cst_40 = arith.constant dense<0.000000e+00> : vector<1xf32>
    %299 = vector.multi_reduction <add>, %298, %cst_40 [1] : vector<1x256xf32> to vector<1xf32>
    %300 = vector.shape_cast %299 : vector<1xf32> to vector<1x1xf32>
    %301 = arith.mulf %5, %297 : vector<1x256xf32>
    %cst_41 = arith.constant dense<0.000000e+00> : vector<1xf32>
    %302 = vector.multi_reduction <add>, %301, %cst_41 [1] : vector<1x256xf32> to vector<1xf32>
    %303 = vector.shape_cast %302 : vector<1xf32> to vector<1x1xf32>
    %304 = arith.mulf %7, %297 : vector<1x256xf32>
    %cst_42 = arith.constant dense<0.000000e+00> : vector<1xf32>
    %305 = vector.multi_reduction <add>, %304, %cst_42 [1] : vector<1x256xf32> to vector<1xf32>
    %306 = vector.shape_cast %305 : vector<1xf32> to vector<1x1xf32>
    %c6_i32 = arith.constant 6 : i32
    %307 = vector.broadcast %c6_i32 : i32 to vector<1x8xi32>
    %308 = arith.cmpi eq, %9, %307 : vector<1x8xi32>
    %309 = vector.shape_cast %300 : vector<1x1xf32> to vector<1x1xf32>
    %310 = vector.broadcast %309 : vector<1x1xf32> to vector<1x8xf32>
    %311 = arith.select %308, %310, %263 : vector<1x8xi1>, vector<1x8xf32>
    %312 = vector.shape_cast %303 : vector<1x1xf32> to vector<1x1xf32>
    %313 = vector.broadcast %312 : vector<1x1xf32> to vector<1x8xf32>
    %314 = arith.select %308, %313, %266 : vector<1x8xi1>, vector<1x8xf32>
    %315 = vector.shape_cast %306 : vector<1x1xf32> to vector<1x1xf32>
    %316 = vector.broadcast %315 : vector<1x1xf32> to vector<1x8xf32>
    %317 = arith.select %308, %316, %269 : vector<1x8xi1>, vector<1x8xf32>
    %318 = vector.broadcast %300 : vector<1x1xf32> to vector<1x256xf32>
    %319 = arith.subf %3, %318 : vector<1x256xf32>
    %320 = vector.broadcast %303 : vector<1x1xf32> to vector<1x256xf32>
    %321 = arith.subf %5, %320 : vector<1x256xf32>
    %322 = vector.broadcast %306 : vector<1x1xf32> to vector<1x256xf32>
    %323 = arith.subf %7, %322 : vector<1x256xf32>
    %324 = arith.mulf %319, %319 : vector<1x256xf32>
    %325 = arith.mulf %321, %321 : vector<1x256xf32>
    %326 = arith.addf %324, %325 : vector<1x256xf32>
    %327 = arith.mulf %323, %323 : vector<1x256xf32>
    %328 = arith.addf %326, %327 : vector<1x256xf32>
    %329 = arith.minimumf %281, %328 : vector<1x256xf32>
    %330 = vector.shape_cast %329 : vector<1x256xf32> to vector<1x1x256xf32>
    %cst_43 = arith.constant dense<0xFF800000> : vector<1xf32>
    %331 = vector.multi_reduction <maximumf>, %330, %cst_43 [1, 2] : vector<1x1x256xf32> to vector<1xf32>
    %332 = vector.shape_cast %331 : vector<1xf32> to vector<1x1x1xf32>
    %333 = vector.extract %332[0, 0, 0] : f32 from vector<1x1x1xf32>
    %334 = vector.broadcast %333 : f32 to vector<1x256xf32>
    %335 = arith.cmpf oeq, %329, %334 : vector<1x256xf32>
    %c256_i32_44 = arith.constant 256 : i32
    %336 = vector.broadcast %c256_i32_44 : i32 to vector<1x256xi32>
    %337 = arith.select %335, %8, %336 : vector<1x256xi1>, vector<1x256xi32>
    %338 = vector.shape_cast %337 : vector<1x256xi32> to vector<1x1x256xi32>
    %cst_45 = arith.constant dense<2147483647> : vector<1xi32>
    %339 = vector.multi_reduction <minsi>, %338, %cst_45 [1, 2] : vector<1x1x256xi32> to vector<1xi32>
    %340 = vector.shape_cast %339 : vector<1xi32> to vector<1x1x1xi32>
    %341 = vector.extract %340[0, 0, 0] : i32 from vector<1x1x1xi32>
    %342 = vector.broadcast %341 : i32 to vector<1x256xi32>
    %343 = arith.cmpi eq, %8, %342 : vector<1x256xi32>
    %344 = arith.extui %343 : vector<1x256xi1> to vector<1x256xi32>
    %345 = arith.sitofp %344 : vector<1x256xi32> to vector<1x256xf32>
    %346 = arith.mulf %3, %345 : vector<1x256xf32>
    %cst_46 = arith.constant dense<0.000000e+00> : vector<1xf32>
    %347 = vector.multi_reduction <add>, %346, %cst_46 [1] : vector<1x256xf32> to vector<1xf32>
    %348 = vector.shape_cast %347 : vector<1xf32> to vector<1x1xf32>
    %349 = arith.mulf %5, %345 : vector<1x256xf32>
    %cst_47 = arith.constant dense<0.000000e+00> : vector<1xf32>
    %350 = vector.multi_reduction <add>, %349, %cst_47 [1] : vector<1x256xf32> to vector<1xf32>
    %351 = vector.shape_cast %350 : vector<1xf32> to vector<1x1xf32>
    %352 = arith.mulf %7, %345 : vector<1x256xf32>
    %cst_48 = arith.constant dense<0.000000e+00> : vector<1xf32>
    %353 = vector.multi_reduction <add>, %352, %cst_48 [1] : vector<1x256xf32> to vector<1xf32>
    %354 = vector.shape_cast %353 : vector<1xf32> to vector<1x1xf32>
    %c7_i32 = arith.constant 7 : i32
    %355 = vector.broadcast %c7_i32 : i32 to vector<1x8xi32>
    %356 = arith.cmpi eq, %9, %355 : vector<1x8xi32>
    %357 = vector.shape_cast %348 : vector<1x1xf32> to vector<1x1xf32>
    %358 = vector.broadcast %357 : vector<1x1xf32> to vector<1x8xf32>
    %359 = arith.select %356, %358, %311 : vector<1x8xi1>, vector<1x8xf32>
    %360 = vector.shape_cast %351 : vector<1x1xf32> to vector<1x1xf32>
    %361 = vector.broadcast %360 : vector<1x1xf32> to vector<1x8xf32>
    %362 = arith.select %356, %361, %314 : vector<1x8xi1>, vector<1x8xf32>
    %363 = vector.shape_cast %354 : vector<1x1xf32> to vector<1x1xf32>
    %364 = vector.broadcast %363 : vector<1x1xf32> to vector<1x8xf32>
    %365 = arith.select %356, %364, %317 : vector<1x8xi1>, vector<1x8xf32>
    %366 = vector.broadcast %348 : vector<1x1xf32> to vector<1x256xf32>
    %367 = arith.subf %3, %366 : vector<1x256xf32>
    %368 = vector.broadcast %351 : vector<1x1xf32> to vector<1x256xf32>
    %369 = arith.subf %5, %368 : vector<1x256xf32>
    %370 = vector.broadcast %354 : vector<1x1xf32> to vector<1x256xf32>
    %371 = arith.subf %7, %370 : vector<1x256xf32>
    %372 = arith.mulf %367, %367 : vector<1x256xf32>
    %373 = arith.mulf %369, %369 : vector<1x256xf32>
    %374 = arith.addf %372, %373 : vector<1x256xf32>
    %375 = arith.mulf %371, %371 : vector<1x256xf32>
    %376 = arith.addf %374, %375 : vector<1x256xf32>
    %377 = arith.minimumf %329, %376 : vector<1x256xf32>
    %378 = vector.shape_cast %377 : vector<1x256xf32> to vector<1x1x256xf32>
    %cst_49 = arith.constant dense<0xFF800000> : vector<1xf32>
    %379 = vector.multi_reduction <maximumf>, %378, %cst_49 [1, 2] : vector<1x1x256xf32> to vector<1xf32>
    %380 = vector.shape_cast %379 : vector<1xf32> to vector<1x1x1xf32>
    %381 = vector.extract %380[0, 0, 0] : f32 from vector<1x1x1xf32>
    %382 = vector.broadcast %381 : f32 to vector<1x256xf32>
    %383 = arith.cmpf oeq, %377, %382 : vector<1x256xf32>
    %c256_i32_50 = arith.constant 256 : i32
    %384 = vector.broadcast %c256_i32_50 : i32 to vector<1x256xi32>
    %385 = arith.select %383, %8, %384 : vector<1x256xi1>, vector<1x256xi32>
    %386 = vector.shape_cast %385 : vector<1x256xi32> to vector<1x1x256xi32>
    %cst_51 = arith.constant dense<2147483647> : vector<1xi32>
    %387 = vector.multi_reduction <minsi>, %386, %cst_51 [1, 2] : vector<1x1x256xi32> to vector<1xi32>
    %388 = vector.shape_cast %387 : vector<1xi32> to vector<1x1x1xi32>
    %389 = vector.extract %388[0, 0, 0] : i32 from vector<1x1x1xi32>
    %390 = vector.broadcast %389 : i32 to vector<1x256xi32>
    %391 = arith.cmpi eq, %8, %390 : vector<1x256xi32>
    %392 = arith.extui %391 : vector<1x256xi1> to vector<1x256xi32>
    %393 = arith.sitofp %392 : vector<1x256xi32> to vector<1x256xf32>
    %394 = arith.mulf %3, %393 : vector<1x256xf32>
    %cst_52 = arith.constant dense<0.000000e+00> : vector<1xf32>
    %395 = vector.multi_reduction <add>, %394, %cst_52 [1] : vector<1x256xf32> to vector<1xf32>
    %396 = vector.shape_cast %395 : vector<1xf32> to vector<1x1xf32>
    %397 = arith.mulf %5, %393 : vector<1x256xf32>
    %cst_53 = arith.constant dense<0.000000e+00> : vector<1xf32>
    %398 = vector.multi_reduction <add>, %397, %cst_53 [1] : vector<1x256xf32> to vector<1xf32>
    %399 = vector.shape_cast %398 : vector<1xf32> to vector<1x1xf32>
    %400 = arith.mulf %7, %393 : vector<1x256xf32>
    %cst_54 = arith.constant dense<0.000000e+00> : vector<1xf32>
    %401 = vector.multi_reduction <add>, %400, %cst_54 [1] : vector<1x256xf32> to vector<1xf32>
    %402 = vector.shape_cast %401 : vector<1xf32> to vector<1x1xf32>
    %c8_i32 = arith.constant 8 : i32
    %c0_55 = arith.constant 0 : index
    %c0_56 = arith.constant 0 : index
    %c0_57 = arith.constant 0 : index
    %403 = vector.load %arg3[%c0_55, %c0_56, %c0_57] : memref<1x3x8xf32, #tpu.memory_space<vmem>>, vector<1x1x8xf32>
    %404 = vector.shape_cast %403 : vector<1x1x8xf32> to vector<1x8xf32>
    %405 = vector.shape_cast %359 : vector<1x8xf32> to vector<1x1x8xf32>
    tpu.vector_store %arg3[%c0_55, %c0_56, %c0_57], %405 {strides = array<i32>} : memref<1x3x8xf32, #tpu.memory_space<vmem>>, vector<1x1x8xf32>,
    %c0_58 = arith.constant 0 : index
    %c1_59 = arith.constant 1 : index
    %c0_60 = arith.constant 0 : index
    %406 = vector.load %arg3[%c0_58, %c1_59, %c0_60] : memref<1x3x8xf32, #tpu.memory_space<vmem>>, vector<1x1x8xf32>
    %407 = vector.shape_cast %406 : vector<1x1x8xf32> to vector<1x8xf32>
    %408 = vector.shape_cast %362 : vector<1x8xf32> to vector<1x1x8xf32>
    tpu.vector_store %arg3[%c0_58, %c1_59, %c0_60], %408 {strides = array<i32>} : memref<1x3x8xf32, #tpu.memory_space<vmem>>, vector<1x1x8xf32>,
    %c0_61 = arith.constant 0 : index
    %c2_62 = arith.constant 2 : index
    %c0_63 = arith.constant 0 : index
    %409 = vector.load %arg3[%c0_61, %c2_62, %c0_63] : memref<1x3x8xf32, #tpu.memory_space<vmem>>, vector<1x1x8xf32>
    %410 = vector.shape_cast %409 : vector<1x1x8xf32> to vector<1x8xf32>
    %411 = vector.shape_cast %365 : vector<1x8xf32> to vector<1x1x8xf32>
    tpu.vector_store %arg3[%c0_61, %c2_62, %c0_63], %411 {strides = array<i32>} : memref<1x3x8xf32, #tpu.memory_space<vmem>>, vector<1x1x8xf32>,
    return
  }
  func.func @transform_0(%arg0: i32, %arg1: memref<2xi32, #tpu.memory_space<smem>>) -> (i32, i32, i32) {
    %c0_i32 = arith.constant 0 : i32
    %c0_i32_0 = arith.constant 0 : i32
    %c0_i32_1 = arith.constant 0 : i32
    return %arg0, %c0_i32, %c0_i32_0 : i32, i32, i32
  }
  func.func @transform_1(%arg0: i32, %arg1: memref<2xi32, #tpu.memory_space<smem>>) -> (i32, i32, i32) {
    %c0_i32 = arith.constant 0 : i32
    %c0_i32_0 = arith.constant 0 : i32
    %c0_i32_1 = arith.constant 0 : i32
    return %arg0, %c0_i32, %c0_i32_0 : i32, i32, i32
  }
}

</mosaic_0001>

<llo_original>
// kernel: tpu_custom_call.1
$region0: #{tpu_custom_call.1}
  #allocation0 [shape = 'u32[]', space=smem, size = 0x4, offset = 0x4, fixed_abs, tag = 'smem constant byte address 0x4 - core index']
  #allocation1 [shape = 'u32[72,128]{1,0:T(1,128)}', space=vmem, size = 0x9000, scoped, tag = 'internal scratch']
  #allocation2 [shape = 's32[1]{0}', space=sflag, size = 0x4, scoped, tag = 'scoped memory for tpu_custom_call.1']
  #allocation3 [shape = 'u8[512]{0}', space=smem, size = 0x200, scoped, tag = 'prefetched SMEM operand 0']
  %s0 = inlined_call_operand.vmem [shape: s32[2], index: 0, kind: input, shape index: {}]
  %s1 = inlined_call_operand.vmem [shape: f32[2,3,256], index: 1, kind: input, shape index: {}]
  %s2 = inlined_call_operand.vmem [shape: f32[2,3,8], index: 2, kind: output, shape index: {}]
  %s3 = sld [smem:[#allocation0]]
  $region37: #{tpu_custom_call.1} parent=0
    _
  %s5 = ssub.s32 1, %s3
  %s6 = scalar_select 0, %s5, %s3
  %s8 = sshll.u32 %s0, 4
  %s9 = int_to_ptr.vmem [resolvable:$true] %s8
  %11 = dma.vmem_to_smem %s9, 16, [#allocation3], [#allocation2]
  %13 = dma.done [#allocation2], 16
  %14 = sfence
  loop: start=0, step=1, limit=4
  $region2: #{tpu_custom_call.1} parent=0 // loop_pre_header
    _
  $region3: #{tpu_custom_call.1} parent=0 // loop_header
    %s16 = sphi 0, %s20
    %p17 = scmp.ge.s32.totalorder %s16, 4
    %s26 = sphi 0, %s28
    %s29 = sphi 0, %s26
    %s30 = sphi 0, %s29
    %s46 = sphi 0, %s30
    %s52 = sphi 0, %s54
    %s55 = sphi 0, %s52
    %s56 = sphi 0, %s55
    %s72 = sphi 0, %s56
  $region4: #{tpu_custom_call.1} parent=0 // loop_header_branch
    %19 = sbr.rel (%p17) target = $region8
  $region5: #{tpu_custom_call.1} parent=0 // loop_body
    %s21 = ssub.s32 %s16, 1
    %s22 = ssub.s32 %s16, 2
    %s23 = sadd.s32 %s16, 1
    %s24 = ssub.s32 %s16, %s23
    %p25 = scmp.eq.s32.totalorder %s24, 0
    %s27 = sadd.s32 %s26, 1
    %s28 = scalar_select %p25, %s26, %s27
    %p31 = pneg %p25
    %p32 = scmp.eq.s32.totalorder %s16, 1
    %p33 = por %p31, %p32
    %p34 = scmp.ne.s32.totalorder %s26, %s29
    %p35 = scmp.eq.s32.totalorder %s16, 0
    %p36 = por %p34, %p35
    %p37 = scmp.ne.s32.totalorder %s26, %s29
    %p38 = scmp.eq.s32.totalorder %s21, 1
    %p39 = por %p37, %p38
    %p40 = scmp.ne.s32.totalorder %s29, %s30
    %p41 = scmp.eq.s32.totalorder %s21, 0
    %p42 = por %p40, %p41
    %p43 = scmp.ne.s32.totalorder %s29, %s30
    %p44 = scmp.eq.s32.totalorder %s22, 1
    %p45 = por %p43, %p44
    %p47 = scmp.ne.s32.totalorder %s30, %s46
    %p48 = scmp.eq.s32.totalorder %s22, 0
    %p49 = por %p47, %p48
    %s50 = ssub.s32 %s16, %s23
    %p51 = scmp.eq.s32.totalorder %s50, 0
    %s53 = sadd.s32 %s52, 1
    %s54 = scalar_select %p51, %s52, %s53
    %p57 = pneg %p51
    %p58 = scmp.eq.s32.totalorder %s16, 1
    %p59 = por %p57, %p58
    %p60 = scmp.ne.s32.totalorder %s52, %s55
    %p61 = scmp.eq.s32.totalorder %s16, 0
    %p62 = por %p60, %p61
    %p63 = scmp.ne.s32.totalorder %s52, %s55
    %p64 = scmp.eq.s32.totalorder %s21, 1
    %p65 = por %p63, %p64
    %p66 = scmp.ne.s32.totalorder %s55, %s56
    %p67 = scmp.eq.s32.totalorder %s21, 0
    %p68 = por %p66, %p67
    %p69 = scmp.ne.s32.totalorder %s55, %s56
    %p70 = scmp.eq.s32.totalorder %s22, 1
    %p71 = por %p69, %p70
    %p73 = scmp.ne.s32.totalorder %s56, %s72
    %p74 = scmp.eq.s32.totalorder %s22, 0
    %p75 = por %p73, %p74
    %p76 = scmp.le.s32.totalorder 1, %s16
    %p77 = scmp.lt.s32.totalorder %s16, 3
    %p78 = pnand %p76, %p77
    %p79 = pneg %p78
    // Predicated region
    $region9: #{tpu_custom_call.1} parent=5 // pred_check
      _
    $region10: #{tpu_custom_call.1} parent=5 // pred_check_branch
      %81 = sbr.rel (%p78) target = $region12
    $region11: #{tpu_custom_call.1} parent=5 // pred_region
      %s82 = ssub.s32 %s16, 1
    $region12: #{tpu_custom_call.1} parent=5 // pred_fallthru
      _
    %p83 = scmp.lt.s32.totalorder %s16, 2
    // Predicated region
    $region13: #{tpu_custom_call.1} parent=5 // pred_check
      %p84 = pneg %p83
    $region14: #{tpu_custom_call.1} parent=5 // pred_check_branch
      %86 = sbr.rel (%p84) target = $region16
    $region15: #{tpu_custom_call.1} parent=5 // pred_region
      // Predicated region
      $region17: #{tpu_custom_call.1} parent=15 // pred_check
        %p87 = pneg %p36
      $region18: #{tpu_custom_call.1} parent=15 // pred_check_branch
        %89 = sbr.rel (%p87) target = $region20
      $region19: #{tpu_custom_call.1} parent=15 // pred_region
        %p90 = scmp.lt.s32.totalorder %s16, 1
        %s91 = scalar_select %p90, %s16, 1
        %s92 = smul.addr %s91, 2
        %s93 = smul.addr %s92, 4
        %s94 = scalar_lea.vmem %s1, %s93
      $region20: #{tpu_custom_call.1} parent=15 // pred_fallthru
        _
    $region16: #{tpu_custom_call.1} parent=5 // pred_fallthru
      _
    %p95 = scmp.le.s32.totalorder 1, %s16
    %p96 = scmp.lt.s32.totalorder %s16, 3
    %p97 = pnand %p95, %p96
    %p98 = pneg %p97
    // Predicated region
    $region21: #{tpu_custom_call.1} parent=5 // pred_check
      _
    $region22: #{tpu_custom_call.1} parent=5 // pred_check_branch
      %100 = sbr.rel (%p97) target = $region24
    $region23: #{tpu_custom_call.1} parent=5 // pred_region
      %s101 = ssub.s32 %s16, 1
      %p102 = scmp.lt.s32.totalorder %s21, 1
      %s103 = scalar_select %p102, %s21, 1
      %s104 = smul.addr %s103, 2
      %s105 = smul.addr %s104, 4
      %s106 = scalar_lea.vmem %s1, %s105
      %p107 = pneg %p42
      %p108 = pneg %p39
      %p109 = pneg %p68
      %p110 = pneg %p65
      %p111 = scmp.lt.s32.totalorder %s21, 1
      %s112 = scalar_select %p111, %s21, 1
      %s113 = smul.addr %s112, 4
      %s114 = scalar_lea.vmem %s2, %s113
      %p115 = scmp.lt.s32.totalorder %s21, 1
      %s116 = scalar_select %p115, %s21, 1
      %s117 = smul.addr %s116, 2
      %s118 = smul.addr %s117, 4
      %s119 = scalar_lea.vmem %s1, %s118
      %p120 = scmp.lt.s32.totalorder %s21, 1
      %s121 = scalar_select %p120, %s21, 1
      %s122 = smul.addr %s121, 4
      %s123 = scalar_lea.vmem %s2, %s122
      %s124 = sld [smem:[#allocation3 + %s21]]
      %v125 = vld [vmem:[%s119] ss:$4 sm:$0x3]
      %s126 = scalar_lea.vmem %s119, 1
      %v127 = vld [vmem:[%s126] ss:$4 sm:$0x3]
      %s128 = scalar_lea.vmem %s119, 2
      %v129 = vld [vmem:[%s128] ss:$4 sm:$0x3]
      %v130 = vlaneseq
      %v131 = vand.u32 %v130, 127
      %v132 = vadd.s32 %v131, 128
      %v133 = vstv %s124
      %vm134 = vcmp.lt.s32.totalorder %v131, %v133
      %vm135 = vcmp.lt.s32.totalorder %v132, %v133
      %v136 = vsel %vm134, inf, -inf
      %v137 = vsel %vm135, inf, -inf
      %vm138 = vcmp.eq.s32.totalorder %v131, 0
      %140 = vset.pattern.permute.xlu0 0
      %141 = vperm.xlu0 %140, %v125
      %v142 = vpop.permute.xlu0 %141
      %v144 = vperm.slane %v142, 0
      %v145 = vsel %vm138, %v144, 0.0
      %147 = vset.pattern.permute.xlu0 0
      %148 = vperm.xlu0 %147, %v127
      %v149 = vpop.permute.xlu0 %148
      %v151 = vperm.slane %v149, 0
      %v152 = vsel %vm138, %v151, 0.0
      %154 = vset.pattern.permute.xlu0 0
      %155 = vperm.xlu0 %154, %v129
      %v156 = vpop.permute.xlu0 %155
      %v158 = vperm.slane %v156, 0
      %v159 = vsel %vm138, %v158, 0.0
      %v160 = vsub.f32 %v125, %v144
      %v161 = vsub.f32 %v127, %v151
      %v162 = vsub.f32 %v129, %v158
      %v163 = vmul.f32 %v160, %v160
      %v164 = vmul.f32 %v161, %v161
      %v165 = vadd.f32 %v163, %v164
      %v166 = vmul.f32 %v162, %v162
      %v167 = vadd.f32 %v165, %v166
      %v169 = vperm.slane %v167, 0
      %v170 = vperm.slane %v167, 1
      %v173 = vmin.f32 %v136, %v169
      %v174 = vmin.f32 %v137, %v170
      %vm175 = vcmask 1040384
      %v176 = vsel %vm175, %v173, -inf
      %v177 = vsel %vm175, %v174, -inf
      %v178 = vmax.f32 %v176, %v177
      %179 = vmax.xlane.f32.xlu0 %v178
      %v180 = vpop.xlane.xlu0 %179
      %v181 = vrot.slane %v180, 4
      %v182 = vmax.f32 %v180, %v181
      %v183 = vrot.slane %v182, 2
      %v184 = vmax.f32 %v182, %v183
      %v185 = vrot.slane %v184, 1
      %v186 = vmax.f32 %v184, %v185
      %s187 = vtos %v186
      %v188 = vstv %s187
      %vm189 = vcmp.eq.f32.partialorder %v173, %v188
      %vm190 = vcmp.eq.f32.partialorder %v174, %v188
      %v191 = vsel %vm189, %v131, 256
      %v192 = vsel %vm190, %v132, 256
      %v193 = vsel %vm175, %v191, 2147483647
      %v194 = vsel %vm175, %v192, 2147483647
      %vm195 = vcmp.lt.s32.totalorder %v193, %v194
      %v196 = vsel %vm195, %v193, %v194
      %v197 = vand.u32 %v196, 65535
      %v198 = vshra.s32 %v196, 16
      %v199 = vcvt.s32.f32 %v197
      %v200 = vcvt.s32.f32 %v198
      %201 = vmin.xlane.f32.xlu0 %v200
      %v202 = vpop.xlane.xlu0 %201
      %vm203 = vcmp.eq.f32.partialorder %v200, %v202
      %v204 = vsel %vm203, %v199, inf
      %205 = vmin.xlane.f32.xlu0 %v204
      %v206 = vpop.xlane.xlu0 %205
      %v207 = vcvt.f32.s32 %v206
      %v208 = vcvt.f32.s32 %v202
      %v209 = vshll.u32 %v208, 16
      %v210 = vadd.s32 %v209, %v207
      %v211 = vrot.slane %v210, 4
      %vm212 = vcmp.lt.s32.totalorder %v210, %v211
      %v213 = vsel %vm212, %v210, %v211
      %v214 = vrot.slane %v213, 2
      %vm215 = vcmp.lt.s32.totalorder %v213, %v214
      %v216 = vsel %vm215, %v213, %v214
      %v217 = vrot.slane %v216, 1
      %vm218 = vcmp.lt.s32.totalorder %v216, %v217
      %v219 = vsel %vm218, %v216, %v217
      %s220 = vtos %v219
      %v221 = vstv %s220
      %vm222 = vcmp.eq.s32.totalorder %v131, %v221
      %vm223 = vcmp.eq.s32.totalorder %v132, %v221
      %v224 = vsel %vm222, 1, 0
      %v225 = vsel %vm223, 1, 0
      %v226 = vcvt.s32.f32 %v224
      %v227 = vcvt.s32.f32 %v225
      %v230 = vrot.slane %v227, 7
      %v231 = vsel %vm175, %v226, %v230
      %v233 = vmul.f32 %v125, %v231
      %v235 = vperm.slane %v233, 0
      %v236 = vperm.slane %v233, 1
      %v239 = vsel %vm175, %v235, 0.0
      %v240 = vsel %vm175, %v236, 0.0
      %v241 = vadd.f32 %v239, %v240
      %242 = vadd.xlane.f32.xlu0 %v241
      %v243 = vpop.xlane.xlu0 %242
      %v244 = vmul.f32 %v127, %v231
      %v246 = vperm.slane %v244, 0
      %v247 = vperm.slane %v244, 1
      %v250 = vsel %vm175, %v246, 0.0
      %v251 = vsel %vm175, %v247, 0.0
      %v252 = vadd.f32 %v250, %v251
      %253 = vadd.xlane.f32.xlu0 %v252
      %v254 = vpop.xlane.xlu0 %253
      %v255 = vmul.f32 %v129, %v231
      %v257 = vperm.slane %v255, 0
      %v258 = vperm.slane %v255, 1
      %v261 = vsel %vm175, %v257, 0.0
      %v262 = vsel %vm175, %v258, 0.0
      %v263 = vadd.f32 %v261, %v262
      %264 = vadd.xlane.f32.xlu0 %v263
      %v265 = vpop.xlane.xlu0 %264
      %vm266 = vcmp.eq.s32.totalorder %v131, 1
      %v267 = vsel %vm266, %v243, %v145
      %v268 = vsel %vm266, %v254, %v152
      %v269 = vsel %vm266, %v265, %v159
      %v271 = vperm.slane %v243, 0
      %v273 = vsub.f32 %v125, %v271
      %v275 = vperm.slane %v254, 0
      %v277 = vsub.f32 %v127, %v275
      %v279 = vperm.slane %v265, 0
      %v281 = vsub.f32 %v129, %v279
      %v282 = vmul.f32 %v273, %v273
      %v283 = vmul.f32 %v277, %v277
      %v284 = vadd.f32 %v282, %v283
      %v285 = vmul.f32 %v281, %v281
      %v286 = vadd.f32 %v284, %v285
      %v288 = vperm.slane %v286, 0
      %v289 = vperm.slane %v286, 1
      %v292 = vmin.f32 %v173, %v288
      %v293 = vmin.f32 %v174, %v289
      %v294 = vsel %vm175, %v292, -inf
      %v295 = vsel %vm175, %v293, -inf
      %v296 = vmax.f32 %v294, %v295
      %297 = vmax.xlane.f32.xlu0 %v296
      %v298 = vpop.xlane.xlu0 %297
      %v299 = vrot.slane %v298, 4
      %v300 = vmax.f32 %v298, %v299
      %v301 = vrot.slane %v300, 2
      %v302 = vmax.f32 %v300, %v301
      %v303 = vrot.slane %v302, 1
      %v304 = vmax.f32 %v302, %v303
      %s305 = vtos %v304
      %v306 = vstv %s305
      %vm307 = vcmp.eq.f32.partialorder %v292, %v306
      %vm308 = vcmp.eq.f32.partialorder %v293, %v306
      %v309 = vsel %vm307, %v131, 256
      %v310 = vsel %vm308, %v132, 256
      %v311 = vsel %vm175, %v309, 2147483647
      %v312 = vsel %vm175, %v310, 2147483647
      %vm313 = vcmp.lt.s32.totalorder %v311, %v312
      %v314 = vsel %vm313, %v311, %v312
      %v315 = vand.u32 %v314, 65535
      %v316 = vshra.s32 %v314, 16
      %v317 = vcvt.s32.f32 %v315
      %v318 = vcvt.s32.f32 %v316
      %319 = vmin.xlane.f32.xlu0 %v318
      %v320 = vpop.xlane.xlu0 %319
      %vm321 = vcmp.eq.f32.partialorder %v318, %v320
      %v322 = vsel %vm321, %v317, inf
      %323 = vmin.xlane.f32.xlu0 %v322
      %v324 = vpop.xlane.xlu0 %323
      %v325 = vcvt.f32.s32 %v324
      %v326 = vcvt.f32.s32 %v320
      %v327 = vshll.u32 %v326, 16
      %v328 = vadd.s32 %v327, %v325
      %v329 = vrot.slane %v328, 4
      %vm330 = vcmp.lt.s32.totalorder %v328, %v329
      %v331 = vsel %vm330, %v328, %v329
      %v332 = vrot.slane %v331, 2
      %vm333 = vcmp.lt.s32.totalorder %v331, %v332
      %v334 = vsel %vm333, %v331, %v332
      %v335 = vrot.slane %v334, 1
      %vm336 = vcmp.lt.s32.totalorder %v334, %v335
      %v337 = vsel %vm336, %v334, %v335
      %s338 = vtos %v337
      %v339 = vstv %s338
      %vm340 = vcmp.eq.s32.totalorder %v131, %v339
      %vm341 = vcmp.eq.s32.totalorder %v132, %v339
      %v342 = vsel %vm340, 1, 0
      %v343 = vsel %vm341, 1, 0
      %v344 = vcvt.s32.f32 %v342
      %v345 = vcvt.s32.f32 %v343
      %v348 = vrot.slane %v345, 7
      %v349 = vsel %vm175, %v344, %v348
      %v351 = vmul.f32 %v125, %v349
      %v353 = vperm.slane %v351, 0
      %v354 = vperm.slane %v351, 1
      %v357 = vsel %vm175, %v353, 0.0
      %v358 = vsel %vm175, %v354, 0.0
      %v359 = vadd.f32 %v357, %v358
      %360 = vadd.xlane.f32.xlu0 %v359
      %v361 = vpop.xlane.xlu0 %360
      %v362 = vmul.f32 %v127, %v349
      %v364 = vperm.slane %v362, 0
      %v365 = vperm.slane %v362, 1
      %v368 = vsel %vm175, %v364, 0.0
      %v369 = vsel %vm175, %v365, 0.0
      %v370 = vadd.f32 %v368, %v369
      %371 = vadd.xlane.f32.xlu0 %v370
      %v372 = vpop.xlane.xlu0 %371
      %v373 = vmul.f32 %v129, %v349
      %v375 = vperm.slane %v373, 0
      %v376 = vperm.slane %v373, 1
      %v379 = vsel %vm175, %v375, 0.0
      %v380 = vsel %vm175, %v376, 0.0
      %v381 = vadd.f32 %v379, %v380
      %382 = vadd.xlane.f32.xlu0 %v381
      %v383 = vpop.xlane.xlu0 %382
      %vm384 = vcmp.eq.s32.totalorder %v131, 2
      %v385 = vsel %vm384, %v361, %v267
      %v386 = vsel %vm384, %v372, %v268
      %v387 = vsel %vm384, %v383, %v269
      %v389 = vperm.slane %v361, 0
      %v391 = vsub.f32 %v125, %v389
      %v393 = vperm.slane %v372, 0
      %v395 = vsub.f32 %v127, %v393
      %v397 = vperm.slane %v383, 0
      %v399 = vsub.f32 %v129, %v397
      %v400 = vmul.f32 %v391, %v391
      %v401 = vmul.f32 %v395, %v395
      %v402 = vadd.f32 %v400, %v401
      %v403 = vmul.f32 %v399, %v399
      %v404 = vadd.f32 %v402, %v403
      %v406 = vperm.slane %v404, 0
      %v407 = vperm.slane %v404, 1
      %v410 = vmin.f32 %v292, %v406
      %v411 = vmin.f32 %v293, %v407
      %v412 = vsel %vm175, %v410, -inf
      %v413 = vsel %vm175, %v411, -inf
      %v414 = vmax.f32 %v412, %v413
      %415 = vmax.xlane.f32.xlu0 %v414
      %v416 = vpop.xlane.xlu0 %415
      %v417 = vrot.slane %v416, 4
      %v418 = vmax.f32 %v416, %v417
      %v419 = vrot.slane %v418, 2
      %v420 = vmax.f32 %v418, %v419
      %v421 = vrot.slane %v420, 1
      %v422 = vmax.f32 %v420, %v421
      %s423 = vtos %v422
      %v424 = vstv %s423
      %vm425 = vcmp.eq.f32.partialorder %v410, %v424
      %vm426 = vcmp.eq.f32.partialorder %v411, %v424
      %v427 = vsel %vm425, %v131, 256
      %v428 = vsel %vm426, %v132, 256
      %v429 = vsel %vm175, %v427, 2147483647
      %v430 = vsel %vm175, %v428, 2147483647
      %vm431 = vcmp.lt.s32.totalorder %v429, %v430
      %v432 = vsel %vm431, %v429, %v430
      %v433 = vand.u32 %v432, 65535
      %v434 = vshra.s32 %v432, 16
      %v435 = vcvt.s32.f32 %v433
      %v436 = vcvt.s32.f32 %v434
      %437 = vmin.xlane.f32.xlu0 %v436
      %v438 = vpop.xlane.xlu0 %437
      %vm439 = vcmp.eq.f32.partialorder %v436, %v438
      %v440 = vsel %vm439, %v435, inf
      %441 = vmin.xlane.f32.xlu0 %v440
      %v442 = vpop.xlane.xlu0 %441
      %v443 = vcvt.f32.s32 %v442
      %v444 = vcvt.f32.s32 %v438
      %v445 = vshll.u32 %v444, 16
      %v446 = vadd.s32 %v445, %v443
      %v447 = vrot.slane %v446, 4
      %vm448 = vcmp.lt.s32.totalorder %v446, %v447
      %v449 = vsel %vm448, %v446, %v447
      %v450 = vrot.slane %v449, 2
      %vm451 = vcmp.lt.s32.totalorder %v449, %v450
      %v452 = vsel %vm451, %v449, %v450
      %v453 = vrot.slane %v452, 1
      %vm454 = vcmp.lt.s32.totalorder %v452, %v453
      %v455 = vsel %vm454, %v452, %v453
      %s456 = vtos %v455
      %v457 = vstv %s456
      %vm458 = vcmp.eq.s32.totalorder %v131, %v457
      %vm459 = vcmp.eq.s32.totalorder %v132, %v457
      %v460 = vsel %vm458, 1, 0
      %v461 = vsel %vm459, 1, 0
      %v462 = vcvt.s32.f32 %v460
      %v463 = vcvt.s32.f32 %v461
      %v466 = vrot.slane %v463, 7
      %v467 = vsel %vm175, %v462, %v466
      %v469 = vmul.f32 %v125, %v467
      %v471 = vperm.slane %v469, 0
      %v472 = vperm.slane %v469, 1
      %v475 = vsel %vm175, %v471, 0.0
      %v476 = vsel %vm175, %v472, 0.0
      %v477 = vadd.f32 %v475, %v476
      %478 = vadd.xlane.f32.xlu0 %v477
      %v479 = vpop.xlane.xlu0 %478
      %v480 = vmul.f32 %v127, %v467
      %v482 = vperm.slane %v480, 0
      %v483 = vperm.slane %v480, 1
      %v486 = vsel %vm175, %v482, 0.0
      %v487 = vsel %vm175, %v483, 0.0
      %v488 = vadd.f32 %v486, %v487
      %489 = vadd.xlane.f32.xlu0 %v488
      %v490 = vpop.xlane.xlu0 %489
      %v491 = vmul.f32 %v129, %v467
      %v493 = vperm.slane %v491, 0
      %v494 = vperm.slane %v491, 1
      %v497 = vsel %vm175, %v493, 0.0
      %v498 = vsel %vm175, %v494, 0.0
      %v499 = vadd.f32 %v497, %v498
      %500 = vadd.xlane.f32.xlu0 %v499
      %v501 = vpop.xlane.xlu0 %500
      %vm502 = vcmp.eq.s32.totalorder %v131, 3
      %v503 = vsel %vm502, %v479, %v385
      %v504 = vsel %vm502, %v490, %v386
      %v505 = vsel %vm502, %v501, %v387
      %v507 = vperm.slane %v479, 0
      %v509 = vsub.f32 %v125, %v507
      %v511 = vperm.slane %v490, 0
      %v513 = vsub.f32 %v127, %v511
      %v515 = vperm.slane %v501, 0
      %v517 = vsub.f32 %v129, %v515
      %v518 = vmul.f32 %v509, %v509
      %v519 = vmul.f32 %v513, %v513
      %v520 = vadd.f32 %v518, %v519
      %v521 = vmul.f32 %v517, %v517
      %v522 = vadd.f32 %v520, %v521
      %v524 = vperm.slane %v522, 0
      %v525 = vperm.slane %v522, 1
      %v528 = vmin.f32 %v410, %v524
      %v529 = vmin.f32 %v411, %v525
      %v530 = vsel %vm175, %v528, -inf
      %v531 = vsel %vm175, %v529, -inf
      %v532 = vmax.f32 %v530, %v531
      %533 = vmax.xlane.f32.xlu0 %v532
      %v534 = vpop.xlane.xlu0 %533
      %v535 = vrot.slane %v534, 4
      %v536 = vmax.f32 %v534, %v535
      %v537 = vrot.slane %v536, 2
      %v538 = vmax.f32 %v536, %v537
      %v539 = vrot.slane %v538, 1
      %v540 = vmax.f32 %v538, %v539
      %s541 = vtos %v540
      %v542 = vstv %s541
      %vm543 = vcmp.eq.f32.partialorder %v528, %v542
      %vm544 = vcmp.eq.f32.partialorder %v529, %v542
      %v545 = vsel %vm543, %v131, 256
      %v546 = vsel %vm544, %v132, 256
      %v547 = vsel %vm175, %v545, 2147483647
      %v548 = vsel %vm175, %v546, 2147483647
      %vm549 = vcmp.lt.s32.totalorder %v547, %v548
      %v550 = vsel %vm549, %v547, %v548
      %v551 = vand.u32 %v550, 65535
      %v552 = vshra.s32 %v550, 16
      %v553 = vcvt.s32.f32 %v551
      %v554 = vcvt.s32.f32 %v552
      %555 = vmin.xlane.f32.xlu0 %v554
      %v556 = vpop.xlane.xlu0 %555
      %vm557 = vcmp.eq.f32.partialorder %v554, %v556
      %v558 = vsel %vm557, %v553, inf
      %559 = vmin.xlane.f32.xlu0 %v558
      %v560 = vpop.xlane.xlu0 %559
      %v561 = vcvt.f32.s32 %v560
      %v562 = vcvt.f32.s32 %v556
      %v563 = vshll.u32 %v562, 16
      %v564 = vadd.s32 %v563, %v561
      %v565 = vrot.slane %v564, 4
      %vm566 = vcmp.lt.s32.totalorder %v564, %v565
      %v567 = vsel %vm566, %v564, %v565
      %v568 = vrot.slane %v567, 2
      %vm569 = vcmp.lt.s32.totalorder %v567, %v568
      %v570 = vsel %vm569, %v567, %v568
      %v571 = vrot.slane %v570, 1
      %vm572 = vcmp.lt.s32.totalorder %v570, %v571
      %v573 = vsel %vm572, %v570, %v571
      %s574 = vtos %v573
      %v575 = vstv %s574
      %vm576 = vcmp.eq.s32.totalorder %v131, %v575
      %vm577 = vcmp.eq.s32.totalorder %v132, %v575
      %v578 = vsel %vm576, 1, 0
      %v579 = vsel %vm577, 1, 0
      %v580 = vcvt.s32.f32 %v578
      %v581 = vcvt.s32.f32 %v579
      %v584 = vrot.slane %v581, 7
      %v585 = vsel %vm175, %v580, %v584
      %v587 = vmul.f32 %v125, %v585
      %v589 = vperm.slane %v587, 0
      %v590 = vperm.slane %v587, 1
      %v593 = vsel %vm175, %v589, 0.0
      %v594 = vsel %vm175, %v590, 0.0
      %v595 = vadd.f32 %v593, %v594
      %596 = vadd.xlane.f32.xlu0 %v595
      %v597 = vpop.xlane.xlu0 %596
      %v598 = vmul.f32 %v127, %v585
      %v600 = vperm.slane %v598, 0
      %v601 = vperm.slane %v598, 1
      %v604 = vsel %vm175, %v600, 0.0
      %v605 = vsel %vm175, %v601, 0.0
      %v606 = vadd.f32 %v604, %v605
      %607 = vadd.xlane.f32.xlu0 %v606
      %v608 = vpop.xlane.xlu0 %607
      %v609 = vmul.f32 %v129, %v585
      %v611 = vperm.slane %v609, 0
      %v612 = vperm.slane %v609, 1
      %v615 = vsel %vm175, %v611, 0.0
      %v616 = vsel %vm175, %v612, 0.0
      %v617 = vadd.f32 %v615, %v616
      %618 = vadd.xlane.f32.xlu0 %v617
      %v619 = vpop.xlane.xlu0 %618
      %vm620 = vcmp.eq.s32.totalorder %v131, 4
      %v621 = vsel %vm620, %v597, %v503
      %v622 = vsel %vm620, %v608, %v504
      %v623 = vsel %vm620, %v619, %v505
      %v625 = vperm.slane %v597, 0
      %v627 = vsub.f32 %v125, %v625
      %v629 = vperm.slane %v608, 0
      %v631 = vsub.f32 %v127, %v629
      %v633 = vperm.slane %v619, 0
      %v635 = vsub.f32 %v129, %v633
      %v636 = vmul.f32 %v627, %v627
      %v637 = vmul.f32 %v631, %v631
      %v638 = vadd.f32 %v636, %v637
      %v639 = vmul.f32 %v635, %v635
      %v640 = vadd.f32 %v638, %v639
      %v642 = vperm.slane %v640, 0
      %v643 = vperm.slane %v640, 1
      %v646 = vmin.f32 %v528, %v642
      %v647 = vmin.f32 %v529, %v643
      %v648 = vsel %vm175, %v646, -inf
      %v649 = vsel %vm175, %v647, -inf
      %v650 = vmax.f32 %v648, %v649
      %651 = vmax.xlane.f32.xlu0 %v650
      %v652 = vpop.xlane.xlu0 %651
      %v653 = vrot.slane %v652, 4
      %v654 = vmax.f32 %v652, %v653
      %v655 = vrot.slane %v654, 2
      %v656 = vmax.f32 %v654, %v655
      %v657 = vrot.slane %v656, 1
      %v658 = vmax.f32 %v656, %v657
      %s659 = vtos %v658
      %v660 = vstv %s659
      %vm661 = vcmp.eq.f32.partialorder %v646, %v660
      %vm662 = vcmp.eq.f32.partialorder %v647, %v660
      %v663 = vsel %vm661, %v131, 256
      %v664 = vsel %vm662, %v132, 256
      %v665 = vsel %vm175, %v663, 2147483647
      %v666 = vsel %vm175, %v664, 2147483647
      %vm667 = vcmp.lt.s32.totalorder %v665, %v666
      %v668 = vsel %vm667, %v665, %v666
      %v669 = vand.u32 %v668, 65535
      %v670 = vshra.s32 %v668, 16
      %v671 = vcvt.s32.f32 %v669
      %v672 = vcvt.s32.f32 %v670
      %673 = vmin.xlane.f32.xlu0 %v672
      %v674 = vpop.xlane.xlu0 %673
      %vm675 = vcmp.eq.f32.partialorder %v672, %v674
      %v676 = vsel %vm675, %v671, inf
      %677 = vmin.xlane.f32.xlu0 %v676
      %v678 = vpop.xlane.xlu0 %677
      %v679 = vcvt.f32.s32 %v678
      %v680 = vcvt.f32.s32 %v674
      %v681 = vshll.u32 %v680, 16
      %v682 = vadd.s32 %v681, %v679
      %v683 = vrot.slane %v682, 4
      %vm684 = vcmp.lt.s32.totalorder %v682, %v683
      %v685 = vsel %vm684, %v682, %v683
      %v686 = vrot.slane %v685, 2
      %vm687 = vcmp.lt.s32.totalorder %v685, %v686
      %v688 = vsel %vm687, %v685, %v686
      %v689 = vrot.slane %v688, 1
      %vm690 = vcmp.lt.s32.totalorder %v688, %v689
      %v691 = vsel %vm690, %v688, %v689
      %s692 = vtos %v691
      %v693 = vstv %s692
      %vm694 = vcmp.eq.s32.totalorder %v131, %v693
      %vm695 = vcmp.eq.s32.totalorder %v132, %v693
      %v696 = vsel %vm694, 1, 0
      %v697 = vsel %vm695, 1, 0
      %v698 = vcvt.s32.f32 %v696
      %v699 = vcvt.s32.f32 %v697
      %v702 = vrot.slane %v699, 7
      %v703 = vsel %vm175, %v698, %v702
      %v705 = vmul.f32 %v125, %v703
      %v707 = vperm.slane %v705, 0
      %v708 = vperm.slane %v705, 1
      %v711 = vsel %vm175, %v707, 0.0
      %v712 = vsel %vm175, %v708, 0.0
      %v713 = vadd.f32 %v711, %v712
      %714 = vadd.xlane.f32.xlu0 %v713
      %v715 = vpop.xlane.xlu0 %714
      %v716 = vmul.f32 %v127, %v703
      %v718 = vperm.slane %v716, 0
      %v719 = vperm.slane %v716, 1
      %v722 = vsel %vm175, %v718, 0.0
      %v723 = vsel %vm175, %v719, 0.0
      %v724 = vadd.f32 %v722, %v723
      %725 = vadd.xlane.f32.xlu0 %v724
      %v726 = vpop.xlane.xlu0 %725
      %v727 = vmul.f32 %v129, %v703
      %v729 = vperm.slane %v727, 0
      %v730 = vperm.slane %v727, 1
      %v733 = vsel %vm175, %v729, 0.0
      %v734 = vsel %vm175, %v730, 0.0
      %v735 = vadd.f32 %v733, %v734
      %736 = vadd.xlane.f32.xlu0 %v735
      %v737 = vpop.xlane.xlu0 %736
      %vm738 = vcmp.eq.s32.totalorder %v131, 5
      %v739 = vsel %vm738, %v715, %v621
      %v740 = vsel %vm738, %v726, %v622
      %v741 = vsel %vm738, %v737, %v623
      %v743 = vperm.slane %v715, 0
      %v745 = vsub.f32 %v125, %v743
      %v747 = vperm.slane %v726, 0
      %v749 = vsub.f32 %v127, %v747
      %v751 = vperm.slane %v737, 0
      %v753 = vsub.f32 %v129, %v751
      %v754 = vmul.f32 %v745, %v745
      %v755 = vmul.f32 %v749, %v749
      %v756 = vadd.f32 %v754, %v755
      %v757 = vmul.f32 %v753, %v753
      %v758 = vadd.f32 %v756, %v757
      %v760 = vperm.slane %v758, 0
      %v761 = vperm.slane %v758, 1
      %v764 = vmin.f32 %v646, %v760
      %v765 = vmin.f32 %v647, %v761
      %v766 = vsel %vm175, %v764, -inf
      %v767 = vsel %vm175, %v765, -inf
      %v768 = vmax.f32 %v766, %v767
      %769 = vmax.xlane.f32.xlu0 %v768
      %v770 = vpop.xlane.xlu0 %769
      %v771 = vrot.slane %v770, 4
      %v772 = vmax.f32 %v770, %v771
      %v773 = vrot.slane %v772, 2
      %v774 = vmax.f32 %v772, %v773
      %v775 = vrot.slane %v774, 1
      %v776 = vmax.f32 %v774, %v775
      %s777 = vtos %v776
      %v778 = vstv %s777
      %vm779 = vcmp.eq.f32.partialorder %v764, %v778
      %vm780 = vcmp.eq.f32.partialorder %v765, %v778
      %v781 = vsel %vm779, %v131, 256
      %v782 = vsel %vm780, %v132, 256
      %v783 = vsel %vm175, %v781, 2147483647
      %v784 = vsel %vm175, %v782, 2147483647
      %vm785 = vcmp.lt.s32.totalorder %v783, %v784
      %v786 = vsel %vm785, %v783, %v784
      %v787 = vand.u32 %v786, 65535
      %v788 = vshra.s32 %v786, 16
      %v789 = vcvt.s32.f32 %v787
      %v790 = vcvt.s32.f32 %v788
      %791 = vmin.xlane.f32.xlu0 %v790
      %v792 = vpop.xlane.xlu0 %791
      %vm793 = vcmp.eq.f32.partialorder %v790, %v792
      %v794 = vsel %vm793, %v789, inf
      %795 = vmin.xlane.f32.xlu0 %v794
      %v796 = vpop.xlane.xlu0 %795
      %v797 = vcvt.f32.s32 %v796
      %v798 = vcvt.f32.s32 %v792
      %v799 = vshll.u32 %v798, 16
      %v800 = vadd.s32 %v799, %v797
      %v801 = vrot.slane %v800, 4
      %vm802 = vcmp.lt.s32.totalorder %v800, %v801
      %v803 = vsel %vm802, %v800, %v801
      %v804 = vrot.slane %v803, 2
      %vm805 = vcmp.lt.s32.totalorder %v803, %v804
      %v806 = vsel %vm805, %v803, %v804
      %v807 = vrot.slane %v806, 1
      %vm808 = vcmp.lt.s32.totalorder %v806, %v807
      %v809 = vsel %vm808, %v806, %v807
      %s810 = vtos %v809
      %v811 = vstv %s810
      %vm812 = vcmp.eq.s32.totalorder %v131, %v811
      %vm813 = vcmp.eq.s32.totalorder %v132, %v811
      %v814 = vsel %vm812, 1, 0
      %v815 = vsel %vm813, 1, 0
      %v816 = vcvt.s32.f32 %v814
      %v817 = vcvt.s32.f32 %v815
      %v820 = vrot.slane %v817, 7
      %v821 = vsel %vm175, %v816, %v820
      %v823 = vmul.f32 %v125, %v821
      %v825 = vperm.slane %v823, 0
      %v826 = vperm.slane %v823, 1
      %v829 = vsel %vm175, %v825, 0.0
      %v830 = vsel %vm175, %v826, 0.0
      %v831 = vadd.f32 %v829, %v830
      %832 = vadd.xlane.f32.xlu0 %v831
      %v833 = vpop.xlane.xlu0 %832
      %v834 = vmul.f32 %v127, %v821
      %v836 = vperm.slane %v834, 0
      %v837 = vperm.slane %v834, 1
      %v840 = vsel %vm175, %v836, 0.0
      %v841 = vsel %vm175, %v837, 0.0
      %v842 = vadd.f32 %v840, %v841
      %843 = vadd.xlane.f32.xlu0 %v842
      %v844 = vpop.xlane.xlu0 %843
      %v845 = vmul.f32 %v129, %v821
      %v847 = vperm.slane %v845, 0
      %v848 = vperm.slane %v845, 1
      %v851 = vsel %vm175, %v847, 0.0
      %v852 = vsel %vm175, %v848, 0.0
      %v853 = vadd.f32 %v851, %v852
      %854 = vadd.xlane.f32.xlu0 %v853
      %v855 = vpop.xlane.xlu0 %854
      %vm856 = vcmp.eq.s32.totalorder %v131, 6
      %v857 = vsel %vm856, %v833, %v739
      %v858 = vsel %vm856, %v844, %v740
      %v859 = vsel %vm856, %v855, %v741
      %v861 = vperm.slane %v833, 0
      %v863 = vsub.f32 %v125, %v861
      %v865 = vperm.slane %v844, 0
      %v867 = vsub.f32 %v127, %v865
      %v869 = vperm.slane %v855, 0
      %v871 = vsub.f32 %v129, %v869
      %v872 = vmul.f32 %v863, %v863
      %v873 = vmul.f32 %v867, %v867
      %v874 = vadd.f32 %v872, %v873
      %v875 = vmul.f32 %v871, %v871
      %v876 = vadd.f32 %v874, %v875
      %v878 = vperm.slane %v876, 0
      %v879 = vperm.slane %v876, 1
      %v882 = vmin.f32 %v764, %v878
      %v883 = vmin.f32 %v765, %v879
      %v884 = vsel %vm175, %v882, -inf
      %v885 = vsel %vm175, %v883, -inf
      %v886 = vmax.f32 %v884, %v885
      %887 = vmax.xlane.f32.xlu0 %v886
      %v888 = vpop.xlane.xlu0 %887
      %v889 = vrot.slane %v888, 4
      %v890 = vmax.f32 %v888, %v889
      %v891 = vrot.slane %v890, 2
      %v892 = vmax.f32 %v890, %v891
      %v893 = vrot.slane %v892, 1
      %v894 = vmax.f32 %v892, %v893
      %s895 = vtos %v894
      %v896 = vstv %s895
      %vm897 = vcmp.eq.f32.partialorder %v882, %v896
      %vm898 = vcmp.eq.f32.partialorder %v883, %v896
      %v899 = vsel %vm897, %v131, 256
      %v900 = vsel %vm898, %v132, 256
      %v901 = vsel %vm175, %v899, 2147483647
      %v902 = vsel %vm175, %v900, 2147483647
      %vm903 = vcmp.lt.s32.totalorder %v901, %v902
      %v904 = vsel %vm903, %v901, %v902
      %v905 = vand.u32 %v904, 65535
      %v906 = vshra.s32 %v904, 16
      %v907 = vcvt.s32.f32 %v905
      %v908 = vcvt.s32.f32 %v906
      %909 = vmin.xlane.f32.xlu0 %v908
      %v910 = vpop.xlane.xlu0 %909
      %vm911 = vcmp.eq.f32.partialorder %v908, %v910
      %v912 = vsel %vm911, %v907, inf
      %913 = vmin.xlane.f32.xlu0 %v912
      %v914 = vpop.xlane.xlu0 %913
      %v915 = vcvt.f32.s32 %v914
      %v916 = vcvt.f32.s32 %v910
      %v917 = vshll.u32 %v916, 16
      %v918 = vadd.s32 %v917, %v915
      %v919 = vrot.slane %v918, 4
      %vm920 = vcmp.lt.s32.totalorder %v918, %v919
      %v921 = vsel %vm920, %v918, %v919
      %v922 = vrot.slane %v921, 2
      %vm923 = vcmp.lt.s32.totalorder %v921, %v922
      %v924 = vsel %vm923, %v921, %v922
      %v925 = vrot.slane %v924, 1
      %vm926 = vcmp.lt.s32.totalorder %v924, %v925
      %v927 = vsel %vm926, %v924, %v925
      %s928 = vtos %v927
      %v929 = vstv %s928
      %vm930 = vcmp.eq.s32.totalorder %v131, %v929
      %vm931 = vcmp.eq.s32.totalorder %v132, %v929
      %v932 = vsel %vm930, 1, 0
      %v933 = vsel %vm931, 1, 0
      %v934 = vcvt.s32.f32 %v932
      %v935 = vcvt.s32.f32 %v933
      %v938 = vrot.slane %v935, 7
      %v939 = vsel %vm175, %v934, %v938
      %v941 = vmul.f32 %v125, %v939
      %v943 = vperm.slane %v941, 0
      %v944 = vperm.slane %v941, 1
      %v947 = vsel %vm175, %v943, 0.0
      %v948 = vsel %vm175, %v944, 0.0
      %v949 = vadd.f32 %v947, %v948
      %950 = vadd.xlane.f32.xlu0 %v949
      %v951 = vpop.xlane.xlu0 %950
      %v952 = vmul.f32 %v127, %v939
      %v954 = vperm.slane %v952, 0
      %v955 = vperm.slane %v952, 1
      %v958 = vsel %vm175, %v954, 0.0
      %v959 = vsel %vm175, %v955, 0.0
      %v960 = vadd.f32 %v958, %v959
      %961 = vadd.xlane.f32.xlu0 %v960
      %v962 = vpop.xlane.xlu0 %961
      %v963 = vmul.f32 %v129, %v939
      %v965 = vperm.slane %v963, 0
      %v966 = vperm.slane %v963, 1
      %v969 = vsel %vm175, %v965, 0.0
      %v970 = vsel %vm175, %v966, 0.0
      %v971 = vadd.f32 %v969, %v970
      %972 = vadd.xlane.f32.xlu0 %v971
      %v973 = vpop.xlane.xlu0 %972
      %vm974 = vcmp.eq.s32.totalorder %v131, 7
      %v975 = vsel %vm974, %v951, %v857
      %v976 = vsel %vm974, %v962, %v858
      %v977 = vsel %vm974, %v973, %v859
      %vm978 = vcmask 57344
      %979 = vst.msk [vmem:[%s123] sm:$0x1] %vm978, %v975
      %980 = vst.msk [vmem:[%s123 + $0x1] sm:$0x1] %vm978, %v976
      %981 = vst.msk [vmem:[%s123 + $0x2] sm:$0x1] %vm978, %v977
      %p982 = scmp.lt.s32.totalorder %s21, 1
      %s983 = scalar_select %p982, %s21, 1
      %s984 = smul.addr %s983, 4
      %s985 = scalar_lea.vmem %s2, %s984
      // Predicated region
      $region25: #{tpu_custom_call.1} parent=23 // pred_check
        %p986 = pneg %p65
      $region26: #{tpu_custom_call.1} parent=23 // pred_check_branch
        %988 = sbr.rel (%p986) target = $region28
      $region27: #{tpu_custom_call.1} parent=23 // pred_region
        _
      $region28: #{tpu_custom_call.1} parent=23 // pred_fallthru
        _
    $region24: #{tpu_custom_call.1} parent=5 // pred_fallthru
      _
    %p989 = scmp.le.s32.totalorder 2, %s16
    // Predicated region
    $region29: #{tpu_custom_call.1} parent=5 // pred_check
      %p990 = pneg %p989
    $region30: #{tpu_custom_call.1} parent=5 // pred_check_branch
      %992 = sbr.rel (%p990) target = $region32
    $region31: #{tpu_custom_call.1} parent=5 // pred_region
      %s993 = ssub.s32 %s16, 2
      // Predicated region
      $region33: #{tpu_custom_call.1} parent=31 // pred_check
        %p994 = pneg %p71
      $region34: #{tpu_custom_call.1} parent=31 // pred_check_branch
        %996 = sbr.rel (%p994) target = $region36
      $region35: #{tpu_custom_call.1} parent=31 // pred_region
        %p997 = scmp.lt.s32.totalorder %s22, 1
        %s998 = scalar_select %p997, %s22, 1
        %s999 = smul.addr %s998, 4
        %s1000 = scalar_lea.vmem %s2, %s999
      $region36: #{tpu_custom_call.1} parent=31 // pred_fallthru
        _
    $region32: #{tpu_custom_call.1} parent=5 // pred_fallthru
      _
  $region6: #{tpu_custom_call.1} parent=0 // loop_footer
    %s20 = sadd.s32 1, %s16
  $region7: #{tpu_custom_call.1} parent=0 // loop_footer_branch
    %15 = sbr.rel target = $region3
  $region8: #{tpu_custom_call.1} parent=0 // loop_exit
    _

</llo_original>
